<compile_context>
chip_gen: v6e
topology: v6e:2x2x1
jax: 0.10.0
libtpu: 0.0.40
codegen_flags: <defaults>
</compile_context>

<pallas_src>
import functools

import jax
import jax.numpy as jnp
from jax import lax
from jax.experimental import pallas as pl
from jax.experimental.pallas import tpu as pltpu

_Q = 18                     # number of questions (fixed by the module)
_GROUP = 64                 # batch rows folded into one lane-dense super-row
_WIDTH = _GROUP * _Q        # 1152 = 9 * 128 -> exact lane multiple


def _q_bounds(level_group: int):
    if level_group == 0:
        return 0, 3
    if level_group == 1:
        return 3, 13
    return 13, 18


def _all_question_loss_kernel(preds_ref, truths_ref, out_ref, acc_ref, *,
                              q_lo, q_hi, block_rows, num_blocks, total_valid, needs_mask):
    c = pl.program_id(0)                       # core (parallel) index
    i = pl.program_id(1)                       # per-core batch-tile index (arbitrary)
    ncores = pl.num_programs(0)
    blk = c + ncores * i                       # intended global block index (may be a duplicate)

    @pl.when(i == 0)
    def _():
        acc_ref[...] = jnp.zeros_like(acc_ref)

    x = preds_ref[...].astype(jnp.float32)     # (block_rows, 1152) lane-dense
    y = truths_ref[...].astype(jnp.float32)
    # Numerically stable BCE-with-logits: max(x,0) - x*y + softplus(-|x|)
    bce = jnp.maximum(x, 0.0) - x * y + jax.nn.softplus(-jnp.abs(x))

    if needs_mask:
        # Only the last real block (and any clamped duplicate block) can contain padded /
        # out-of-bounds elements; every earlier block takes the cheap unmasked path.
        @pl.when(blk < num_blocks - 1)
        def _():
            acc_ref[...] += jnp.sum(bce, axis=0, keepdims=True)

        @pl.when(blk >= num_blocks - 1)
        def _():
            row = lax.broadcasted_iota(jnp.int32, bce.shape, 0) + blk * block_rows
            col = lax.broadcasted_iota(jnp.int32, bce.shape, 1)
            valid = row * _WIDTH + col < total_valid
            acc_ref[...] += jnp.sum(jnp.where(valid, bce, 0.0), axis=0, keepdims=True)
    else:
        acc_ref[...] += jnp.sum(bce, axis=0, keepdims=True)

    @pl.when(i == pl.num_programs(1) - 1)
    def _():
        acc = acc_ref[...]                                        # (1, 1152)
        q = lax.broadcasted_iota(jnp.int32, acc.shape, 1) % _Q    # column -> question id
        in_q = jnp.logical_and(q >= q_lo, q < q_hi)
        s1 = jnp.sum(jnp.where(in_q, acc, 0.0))                   # sum over q_range
        s2 = jnp.sum(jnp.where(in_q, 0.0, acc))                   # sum over other_range
        lane = lax.broadcasted_iota(jnp.int32, out_ref.shape, 2)
        out_ref[...] = jnp.where(lane == 0, s1, jnp.where(lane == 1, s2, 0.0))


def all_question_loss(preds, truths, level_group):
    """Pallas implementation of AllQuestionLoss.forward -> (loss, loss1)."""
    B, Q = preds.shape
    assert Q == _Q and truths.shape == (B, _Q)
    q_lo, q_hi = _q_bounds(level_group)
    nq = q_hi - q_lo
    other_rate = 0.3  # PyTorch module hardcodes self.other_rate = 0.3 (ctor arg ignored)

    R = -(-B // _GROUP)                  # super-rows of 64 batch samples
    pad_rows = R * _GROUP - B

    def as_lane_dense(a):
        if pad_rows:                     # only materializes a copy when B % 64 != 0
            a = jnp.pad(a, ((0, pad_rows), (0, 0)))
        return a.reshape(R, _WIDTH)      # contiguous -> metadata-only reshape, native dtype

    p2 = as_lane_dense(preds)
    t2 = as_lane_dense(truths)

    # Block sizing: cap at 512 super-rows (~2.25 MiB f32 per input per buffer); for medium
    # batches pick the block so the work splits into two balanced blocks (one per v7x core).
    if R >= 1024:
        block_rows = 512
    elif R >= 16:
        block_rows = 8 * (-(-R // 16))   # multiple of 8, yields exactly 2 balanced blocks
    else:
        block_rows = R                   # single tiny block (== full leading dim)
    num_blocks = -(-R // block_rows)
    ncores = 2 if num_blocks >= 2 else 1
    nb = -(-num_blocks // ncores)        # per-core steps along the "arbitrary" axis
    total_valid = B * _Q
    needs_mask = (ncores * nb * block_rows * _GROUP) > B

    def in_map(c, i):
        # Interleaved block assignment; the clamp keeps the DMA in bounds, and the duplicate
        # block (when num_blocks is odd) is zeroed out by the in-kernel validity mask.
        return (jnp.minimum(c + ncores * i, num_blocks - 1), 0)

    kernel = functools.partial(
        _all_question_loss_kernel, q_lo=q_lo, q_hi=q_hi, block_rows=block_rows,
        num_blocks=num_blocks, total_valid=total_valid, needs_mask=needs_mask)

    cost = pl.CostEstimate(
        flops=12 * B * _Q,
        transcendentals=2 * B * _Q,
        bytes_accessed=B * _Q * (preds.dtype.itemsize + truths.dtype.itemsize)
        + ncores * 8 * 128 * 4)

    part = pl.pallas_call(
        kernel,
        out_shape=jax.ShapeDtypeStruct((ncores, 8, 128), jnp.float32),
        grid_spec=pltpu.PrefetchScalarGridSpec(
            num_scalar_prefetch=0,
            grid=(ncores, nb),
            in_specs=[pl.BlockSpec((block_rows, _WIDTH), in_map),
                      pl.BlockSpec((block_rows, _WIDTH), in_map)],
            out_specs=pl.BlockSpec((1, 8, 128), lambda c, i: (c, 0, 0)),
            scratch_shapes=[pltpu.VMEM((1, _WIDTH), jnp.float32)]),
        compiler_params=pltpu.CompilerParams(
            dimension_semantics=("parallel", "arbitrary"),
            vmem_limit_bytes=32 * 1024 * 1024),
        cost_estimate=cost,
    )(p2, t2)

    s1 = jnp.sum(part[:, 0, 0])          # combine per-core partials (4 scalars) in the wrapper
    s2 = jnp.sum(part[:, 0, 1])
    loss1 = s1 / (B * nq)
    loss2 = s2 / (B * (_Q - nq))
    loss = loss1 * (1.0 - other_rate) + loss2 * other_rate
    return loss, loss1


def _reference(preds, truths, level_group):
    # Pure-JAX reference (matches nn.BCEWithLogitsLoss(reduction='mean')).
    q_lo, q_hi = _q_bounds(level_group)
    x = preds.astype(jnp.float32)
    y = truths.astype(jnp.float32)
    bce = jnp.maximum(x, 0.0) - x * y + jnp.log1p(jnp.exp(-jnp.abs(x)))
    loss1 = jnp.mean(bce[:, q_lo:q_hi])
    loss2 = jnp.mean(jnp.concatenate([bce[:, :q_lo], bce[:, q_hi:]], axis=1))
    return loss1 * 0.7 + loss2 * 0.3, loss1


if __name__ == "__main__":
    key = jax.random.PRNGKey(0)
    k1, k2 = jax.random.split(key)

    def check(preds, truths, level_group):
        loss, loss1 = all_question_loss(preds, truths, level_group)
        loss, loss1 = jax.block_until_ready((loss, loss1))
        ref_loss, ref_loss1 = _reference(preds, truths, level_group)
        assert jnp.allclose(loss, ref_loss, atol=1e-5, rtol=1e-5), (level_group, loss, ref_loss)
        assert jnp.allclose(loss1, ref_loss1, atol=1e-5, rtol=1e-5), (level_group, loss1, ref_loss1)

    # B = 200: not a multiple of 64 -> padded-tail masking, single block, single-core grid.
    B = 200
    preds = jax.random.normal(k1, (B, _Q), dtype=jnp.float32)
    truths = jax.random.bernoulli(k2, 0.5, (B, _Q)).astype(jnp.float32)
    for lg in (0, 1, 2):
        check(preds, truths, lg)

    # B = 1024: aligned, two blocks -> unmasked fast path + 2-way parallel grid split.
    B = 1024
    preds = jax.random.normal(k1, (B, _Q), dtype=jnp.float32)
    truths = jax.random.bernoulli(k2, 0.5, (B, _Q)).astype(jnp.float32)
    check(preds, truths, 1)

    # B = 1000: two blocks with a masked tail; bf16 preds exercise the native-dtype HBM path.
    B = 1000
    preds = jax.random.normal(k1, (B, _Q), dtype=jnp.float32).astype(jnp.bfloat16)
    truths = jax.random.bernoulli(k2, 0.5, (B, _Q)).astype(jnp.float32)
    check(preds, truths, 2)

    print("KERNEL_OK")
</pallas_src>

<mosaic_0001>
module attributes {stable_mosaic.version = 11 : i64} {
  func.func @_all_question_loss_kernel(%arg0: i32, %arg1: i32, %arg2: memref<4x1152xf32, #tpu.memory_space<vmem>>, %arg3: memref<4x1152xf32, #tpu.memory_space<vmem>>, %arg4: memref<1x8x128xf32, #tpu.memory_space<vmem>>, %arg5: memref<1x1152xf32, #tpu.memory_space<vmem>>) attributes {dimension_semantics = [#tpu.dimension_semantics<parallel>, #tpu.dimension_semantics<arbitrary>], iteration_bounds = array<i64: 1, 1>, scalar_prefetch = 0 : i64, scratch_operands = 1 : i64, tpu.core_type = #tpu.core_type<tc>, window_params = [{transform_indices = @transform_0, window_bounds = array<i64: 4, 1152>}, {transform_indices = @transform_1, window_bounds = array<i64: 4, 1152>}, {transform_indices = @transform_2, window_bounds = array<i64: 1, 8, 128>}]} {
    %c1_i32 = arith.constant 1 : i32
    %0 = arith.muli %c1_i32, %arg1 : i32
    %1 = arith.addi %arg0, %0 : i32
    %c0_i32 = arith.constant 0 : i32
    %2 = arith.cmpi eq, %arg1, %c0_i32 : i32
    %3 = arith.extui %2 : i1 to i32
    %c0_i32_0 = arith.constant 0 : i32
    %4 = arith.cmpi ne, %3, %c0_i32_0 : i32
    scf.if %4 {
      %cst_13 = arith.constant 0.000000e+00 : f32
      %38 = vector.broadcast %cst_13 : f32 to vector<1x1152xf32>
      %c0_14 = arith.constant 0 : index
      %c0_15 = arith.constant 0 : index
      %39 = vector.load %arg5[%c0_14, %c0_15] : memref<1x1152xf32, #tpu.memory_space<vmem>>, vector<1x1152xf32>
      tpu.vector_store %arg5[%c0_14, %c0_15], %38 {strides = array<i32>} : memref<1x1152xf32, #tpu.memory_space<vmem>>, vector<1x1152xf32>,
    } else {
    }
    %c0 = arith.constant 0 : index
    %c0_1 = arith.constant 0 : index
    %5 = vector.load %arg2[%c0, %c0_1] : memref<4x1152xf32, #tpu.memory_space<vmem>>, vector<4x1152xf32>
    %c0_2 = arith.constant 0 : index
    %c0_3 = arith.constant 0 : index
    %6 = vector.load %arg3[%c0_2, %c0_3] : memref<4x1152xf32, #tpu.memory_space<vmem>>, vector<4x1152xf32>
    %cst = arith.constant 0.000000e+00 : f32
    %7 = vector.broadcast %cst : f32 to vector<4x1152xf32>
    %8 = arith.maximumf %5, %7 : vector<4x1152xf32>
    %9 = arith.mulf %5, %6 : vector<4x1152xf32>
    %10 = arith.subf %8, %9 : vector<4x1152xf32>
    %11 = math.absf %5 : vector<4x1152xf32>
    %cst_4 = arith.constant 0.000000e+00 : f32
    %12 = vector.broadcast %cst_4 : f32 to vector<4x1152xf32>
    %13 = arith.subf %12, %11 : vector<4x1152xf32>
    %cst_5 = arith.constant 0.000000e+00 : f32
    %14 = vector.broadcast %cst_5 : f32 to vector<4x1152xf32>
    %15 = arith.maximumf %13, %14 : vector<4x1152xf32>
    %16 = vector.broadcast %cst_5 : f32 to vector<4x1152xf32>
    %17 = arith.subf %13, %16 : vector<4x1152xf32>
    %18 = arith.cmpf one, %17, %17 : vector<4x1152xf32>
    %19 = vector.broadcast %cst_5 : f32 to vector<4x1152xf32>
    %20 = arith.addf %13, %19 : vector<4x1152xf32>
    %21 = math.absf %17 : vector<4x1152xf32>
    %cst_6 = arith.constant 0.000000e+00 : f32
    %22 = vector.broadcast %cst_6 : f32 to vector<4x1152xf32>
    %23 = arith.subf %22, %21 : vector<4x1152xf32>
    %24 = math.exp %23 : vector<4x1152xf32>
    %25 = math.log1p %24 : vector<4x1152xf32>
    %26 = arith.addf %15, %25 : vector<4x1152xf32>
    %27 = arith.select %18, %20, %26 : vector<4x1152xi1>, vector<4x1152xf32>
    %28 = arith.addf %10, %27 : vector<4x1152xf32>
    %c0_i32_7 = arith.constant 0 : i32
    %29 = arith.cmpi slt, %1, %c0_i32_7 : i32
    %30 = arith.extui %29 : i1 to i32
    %c0_i32_8 = arith.constant 0 : i32
    %31 = arith.cmpi ne, %30, %c0_i32_8 : i32
    scf.if %31 {
      %c0_13 = arith.constant 0 : index
      %c0_14 = arith.constant 0 : index
      %38 = vector.load %arg5[%c0_13, %c0_14] : memref<1x1152xf32, #tpu.memory_space<vmem>>, vector<1x1152xf32>
      %cst_15 = arith.constant dense<0.000000e+00> : vector<1152xf32>
      %39 = vector.multi_reduction <add>, %28, %cst_15 [0] : vector<4x1152xf32> to vector<1152xf32>
      %40 = vector.shape_cast %39 : vector<1152xf32> to vector<1x1152xf32>
      %41 = arith.addf %38, %40 : vector<1x1152xf32>
      %c0_16 = arith.constant 0 : index
      %c0_17 = arith.constant 0 : index
      %42 = vector.load %arg5[%c0_16, %c0_17] : memref<1x1152xf32, #tpu.memory_space<vmem>>, vector<1x1152xf32>
      tpu.vector_store %arg5[%c0_16, %c0_17], %41 {strides = array<i32>} : memref<1x1152xf32, #tpu.memory_space<vmem>>, vector<1x1152xf32>,
    } else {
    }
    %c0_i32_9 = arith.constant 0 : i32
    %32 = arith.cmpi sge, %1, %c0_i32_9 : i32
    %33 = arith.extui %32 : i1 to i32
    %c0_i32_10 = arith.constant 0 : i32
    %34 = arith.cmpi ne, %33, %c0_i32_10 : i32
    scf.if %34 {
      %38 = tpu.iota {dimensions = array<i32: 0>} : vector<4x1152xi32>
      %c4_i32 = arith.constant 4 : i32
      %39 = arith.muli %1, %c4_i32 : i32
      %40 = vector.broadcast %39 : i32 to vector<4x1152xi32>
      %41 = arith.addi %38, %40 : vector<4x1152xi32>
      %42 = tpu.iota {dimensions = array<i32: 1>} : vector<4x1152xi32>
      %c1152_i32 = arith.constant 1152 : i32
      %43 = vector.broadcast %c1152_i32 : i32 to vector<4x1152xi32>
      %44 = arith.muli %41, %43 : vector<4x1152xi32>
      %45 = arith.addi %44, %42 : vector<4x1152xi32>
      %c3600_i32 = arith.constant 3600 : i32
      %46 = vector.broadcast %c3600_i32 : i32 to vector<4x1152xi32>
      %47 = arith.cmpi slt, %45, %46 : vector<4x1152xi32>
      %c0_13 = arith.constant 0 : index
      %c0_14 = arith.constant 0 : index
      %48 = vector.load %arg5[%c0_13, %c0_14] : memref<1x1152xf32, #tpu.memory_space<vmem>>, vector<1x1152xf32>
      %cst_15 = arith.constant 0.000000e+00 : f32
      %49 = vector.broadcast %cst_15 : f32 to vector<4x1152xf32>
      %50 = arith.select %47, %28, %49 : vector<4x1152xi1>, vector<4x1152xf32>
      %cst_16 = arith.constant dense<0.000000e+00> : vector<1152xf32>
      %51 = vector.multi_reduction <add>, %50, %cst_16 [0] : vector<4x1152xf32> to vector<1152xf32>
      %52 = vector.shape_cast %51 : vector<1152xf32> to vector<1x1152xf32>
      %53 = arith.addf %48, %52 : vector<1x1152xf32>
      %c0_17 = arith.constant 0 : index
      %c0_18 = arith.constant 0 : index
      %54 = vector.load %arg5[%c0_17, %c0_18] : memref<1x1152xf32, #tpu.memory_space<vmem>>, vector<1x1152xf32>
      tpu.vector_store %arg5[%c0_17, %c0_18], %53 {strides = array<i32>} : memref<1x1152xf32, #tpu.memory_space<vmem>>, vector<1x1152xf32>,
    } else {
    }
    %c0_i32_11 = arith.constant 0 : i32
    %35 = arith.cmpi eq, %arg1, %c0_i32_11 : i32
    %36 = arith.extui %35 : i1 to i32
    %c0_i32_12 = arith.constant 0 : i32
    %37 = arith.cmpi ne, %36, %c0_i32_12 : i32
    scf.if %37 {
      %c0_13 = arith.constant 0 : index
      %c0_14 = arith.constant 0 : index
      %38 = vector.load %arg5[%c0_13, %c0_14] : memref<1x1152xf32, #tpu.memory_space<vmem>>, vector<1x1152xf32>
      %39 = tpu.iota {dimensions = array<i32: 1>} : vector<1x1152xi32>
      %c18_i32 = arith.constant 18 : i32
      %c0_i32_15 = arith.constant 0 : i32
      %40 = arith.cmpi eq, %c18_i32, %c0_i32_15 : i32
      %c1_i32_16 = arith.constant 1 : i32
      %41 = arith.select %40, %c1_i32_16, %c18_i32 : i32
      %42 = vector.broadcast %41 : i32 to vector<1x1152xi32>
      %43 = arith.remsi %39, %42 : vector<1x1152xi32>
      %c0_i32_17 = arith.constant 0 : i32
      %44 = vector.broadcast %c0_i32_17 : i32 to vector<1x1152xi32>
      %45 = arith.cmpi ne, %43, %44 : vector<1x1152xi32>
      %c0_i32_18 = arith.constant 0 : i32
      %46 = vector.broadcast %c0_i32_18 : i32 to vector<1x1152xi32>
      %47 = arith.cmpi slt, %43, %46 : vector<1x1152xi32>
      %c0_i32_19 = arith.constant 0 : i32
      %48 = arith.cmpi slt, %41, %c0_i32_19 : i32
      %49 = vector.broadcast %48 : i1 to vector<1x1152xi1>
      %50 = vector.broadcast %49 : vector<1x1152xi1> to vector<1x1152xi1>
      %51 = arith.xori %47, %50 : vector<1x1152xi1>
      %52 = arith.andi %51, %45 : vector<1x1152xi1>
      %53 = vector.broadcast %41 : i32 to vector<1x1152xi32>
      %54 = arith.addi %43, %53 : vector<1x1152xi32>
      %55 = arith.select %52, %54, %43 : vector<1x1152xi1>, vector<1x1152xi32>
      %c0_i32_20 = arith.constant 0 : i32
      %56 = vector.broadcast %c0_i32_20 : i32 to vector<1x1152xi32>
      %57 = arith.cmpi sge, %55, %56 : vector<1x1152xi32>
      %c3_i32 = arith.constant 3 : i32
      %58 = vector.broadcast %c3_i32 : i32 to vector<1x1152xi32>
      %59 = arith.cmpi slt, %55, %58 : vector<1x1152xi32>
      %60 = arith.andi %57, %59 : vector<1x1152xi1>
      %cst_21 = arith.constant 0.000000e+00 : f32
      %61 = vector.broadcast %cst_21 : f32 to vector<1x1152xf32>
      %62 = arith.select %60, %38, %61 : vector<1x1152xi1>, vector<1x1152xf32>
      %63 = vector.shape_cast %62 : vector<1x1152xf32> to vector<1x1x1152xf32>
      %cst_22 = arith.constant dense<0.000000e+00> : vector<1xf32>
      %64 = vector.multi_reduction <add>, %63, %cst_22 [1, 2] : vector<1x1x1152xf32> to vector<1xf32>
      %65 = vector.shape_cast %64 : vector<1xf32> to vector<1x1x1xf32>
      %66 = vector.extract %65[0, 0, 0] : f32 from vector<1x1x1xf32>
      %cst_23 = arith.constant 0.000000e+00 : f32
      %67 = vector.broadcast %cst_23 : f32 to vector<1x1152xf32>
      %68 = arith.select %60, %67, %38 : vector<1x1152xi1>, vector<1x1152xf32>
      %69 = vector.shape_cast %68 : vector<1x1152xf32> to vector<1x1x1152xf32>
      %cst_24 = arith.constant dense<0.000000e+00> : vector<1xf32>
      %70 = vector.multi_reduction <add>, %69, %cst_24 [1, 2] : vector<1x1x1152xf32> to vector<1xf32>
      %71 = vector.shape_cast %70 : vector<1xf32> to vector<1x1x1xf32>
      %72 = vector.extract %71[0, 0, 0] : f32 from vector<1x1x1xf32>
      %73 = tpu.iota {dimensions = array<i32: 2>} : vector<1x8x128xi32>
      %c0_i32_25 = arith.constant 0 : i32
      %74 = vector.broadcast %c0_i32_25 : i32 to vector<1x8x128xi32>
      %75 = arith.cmpi eq, %73, %74 : vector<1x8x128xi32>
      %c1_i32_26 = arith.constant 1 : i32
      %76 = vector.broadcast %c1_i32_26 : i32 to vector<1x8x128xi32>
      %77 = arith.cmpi eq, %73, %76 : vector<1x8x128xi32>
      %cst_27 = arith.constant 0.000000e+00 : f32
      %78 = vector.broadcast %72 : f32 to vector<1x8x128xf32>
      %79 = vector.broadcast %cst_27 : f32 to vector<1x8x128xf32>
      %80 = arith.select %77, %78, %79 : vector<1x8x128xi1>, vector<1x8x128xf32>
      %81 = vector.broadcast %66 : f32 to vector<1x8x128xf32>
      %82 = arith.select %75, %81, %80 : vector<1x8x128xi1>, vector<1x8x128xf32>
      %c0_28 = arith.constant 0 : index
      %c0_29 = arith.constant 0 : index
      %c0_30 = arith.constant 0 : index
      %83 = vector.load %arg4[%c0_28, %c0_29, %c0_30] : memref<1x8x128xf32, #tpu.memory_space<vmem>>, vector<1x8x128xf32>
      tpu.vector_store %arg4[%c0_28, %c0_29, %c0_30], %82 {strides = array<i32>} : memref<1x8x128xf32, #tpu.memory_space<vmem>>, vector<1x8x128xf32>,
    } else {
    }
    return
  }
  func.func @transform_0(%arg0: i32, %arg1: i32) -> (i32, i32) {
    %c1_i32 = arith.constant 1 : i32
    %0 = arith.muli %c1_i32, %arg1 : i32
    %1 = arith.addi %arg0, %0 : i32
    %c0_i32 = arith.constant 0 : i32
    %2 = arith.minsi %1, %c0_i32 : i32
    %c0_i32_0 = arith.constant 0 : i32
    %c0_i32_1 = arith.constant 0 : i32
    return %2, %c0_i32_0 : i32, i32
  }
  func.func @transform_1(%arg0: i32, %arg1: i32) -> (i32, i32) {
    %c1_i32 = arith.constant 1 : i32
    %0 = arith.muli %c1_i32, %arg1 : i32
    %1 = arith.addi %arg0, %0 : i32
    %c0_i32 = arith.constant 0 : i32
    %2 = arith.minsi %1, %c0_i32 : i32
    %c0_i32_0 = arith.constant 0 : i32
    %c0_i32_1 = arith.constant 0 : i32
    return %2, %c0_i32_0 : i32, i32
  }
  func.func @transform_2(%arg0: i32, %arg1: i32) -> (i32, i32, i32) {
    %c0_i32 = arith.constant 0 : i32
    %c0_i32_0 = arith.constant 0 : i32
    %c0_i32_1 = arith.constant 0 : i32
    return %arg0, %c0_i32, %c0_i32_0 : i32, i32, i32
  }
}

</mosaic_0001>

<llo_original>
// kernel: tpu_custom_call.1
$region0: #{tpu_custom_call.1}
  #allocation0 [shape = 'u32[]', space=smem, size = 0x4, offset = 0x4, fixed_abs, tag = 'smem constant byte address 0x4 - core index']
  #allocation1 [shape = 'u32[144,128]{1,0:T(1,128)}', space=vmem, size = 0x12000, scoped, tag = 'internal scratch']
  #allocation2 [shape = 'f32[1,1152]{1,0:T(1,128)}', space=vmem, size = 0x1200, scoped, tag = 'scratch operand']
  %s0 = inlined_call_operand.hbm [shape: f32[4,1152], index: 0, kind: input, shape index: {}]
  %s1 = inlined_call_operand.hbm [shape: f32[4,1152], index: 1, kind: input, shape index: {}]
  %s2 = inlined_call_operand.hbm [shape: f32[1,8,128], index: 2, kind: output, shape index: {}]
  %s3 = sld [smem:[#allocation0]]
  $region42: #{tpu_custom_call.1} parent=0
    _
  %s5 = ssub.s32 1, %s3
  %s6 = scalar_select 0, %s5, %s3
  $region1: #{tpu_custom_call.1} parent=0
    #allocation3 [shape = 'u8[18432]{0}', space=vmem, size = 0x4800, scoped, tag = 'input window, operand 0, single buffered']
    #allocation4 [shape = 's32[1]{0}', space=sflag, size = 0x4, scoped, tag = 'scoped memory for tpu_custom_call.1']
    #allocation5 [shape = 's32[1]{0}', space=sflag, size = 0x4, scoped, tag = 'scoped memory for tpu_custom_call.1']
    #allocation6 [shape = 'u8[18432]{0}', space=vmem, size = 0x4800, scoped, tag = 'input window, operand 1, single buffered']
    #allocation7 [shape = 's32[1]{0}', space=sflag, size = 0x4, scoped, tag = 'scoped memory for tpu_custom_call.1']
    #allocation8 [shape = 'u8[4096]{0}', space=vmem, size = 0x1000, scoped, tag = 'output window, operand 0, single buffered']
    %7 = vsyncpa [#allocation4], 0
    %8 = vsyncpa [#allocation7], 0
    %9 = vsyncpa [#allocation5], 0
    // Predicated region
    $region2: #{tpu_custom_call.1} parent=1 // pred_check
      _
    $region3: #{tpu_custom_call.1} parent=1 // pred_check_branch
      %11 = sbr.rel (0) target = $region5
    $region4: #{tpu_custom_call.1} parent=1 // pred_region
      %s12 = sadd.s32 0, 0
      %p13 = scmp.lt.s32.totalorder %s12, 0
      %s14 = scalar_select %p13, %s12, 0
      %s16 = ssub.s32 576, 576
      %17 = vsyncadd [#allocation4], %s16
      %s18 = smul.addr %s14, 9
      %s19 = smul.addr %s18, 64
      %s20 = scalar_lea.hbm %s0, %s19
      %s22 = sshll.u32 [#allocation3], 4
      %s23 = int_to_ptr.vmem [resolvable:$true] %s22
      %25 = dma.hbm_to_vmem [thread:$0]  %s20, 576, %s23, [#allocation4]
    $region5: #{tpu_custom_call.1} parent=1 // pred_fallthru
      _
    // Predicated region
    $region6: #{tpu_custom_call.1} parent=1 // pred_check
      _
    $region7: #{tpu_custom_call.1} parent=1 // pred_check_branch
      %27 = sbr.rel (0) target = $region9
    $region8: #{tpu_custom_call.1} parent=1 // pred_region
      %s28 = sadd.s32 0, 0
      %p29 = scmp.lt.s32.totalorder %s28, 0
      %s30 = scalar_select %p29, %s28, 0
      %s32 = ssub.s32 576, 576
      %33 = vsyncadd [#allocation7], %s32
      %s34 = smul.addr %s30, 9
      %s35 = smul.addr %s34, 64
      %s36 = scalar_lea.hbm %s1, %s35
      %s38 = sshll.u32 [#allocation6], 4
      %s39 = int_to_ptr.vmem [resolvable:$true] %s38
      %41 = dma.hbm_to_vmem [thread:$0]  %s36, 576, %s39, [#allocation7]
    $region9: #{tpu_custom_call.1} parent=1 // pred_fallthru
      _
    // Predicated region
    $region10: #{tpu_custom_call.1} parent=1 // pred_check
      _
    $region11: #{tpu_custom_call.1} parent=1 // pred_check_branch
      %43 = sbr.rel (0) target = $region13
    $region12: #{tpu_custom_call.1} parent=1 // pred_region
      %44 = dma.done [#allocation4], 576
    $region13: #{tpu_custom_call.1} parent=1 // pred_fallthru
      _
    // Predicated region
    $region14: #{tpu_custom_call.1} parent=1 // pred_check
      _
    $region15: #{tpu_custom_call.1} parent=1 // pred_check_branch
      %46 = sbr.rel (0) target = $region17
    $region16: #{tpu_custom_call.1} parent=1 // pred_region
      %47 = dma.done [#allocation7], 576
    $region17: #{tpu_custom_call.1} parent=1 // pred_fallthru
      _
    %s48 = sadd.s32 0, 0
    %p49 = scmp.lt.s32.totalorder %s48, 0
    %s50 = scalar_select %p49, %s48, 0
    %s51 = sadd.s32 0, 0
    %p52 = scmp.lt.s32.totalorder %s51, 0
    %s53 = scalar_select %p52, %s51, 0
    %s54 = sadd.s32 0, 0
    %p55 = scmp.eq.s32.totalorder 0, 0
    // Predicated region
    $region18: #{tpu_custom_call.1} parent=1 // pred_check
      %p56 = pneg %p55
    $region19: #{tpu_custom_call.1} parent=1 // pred_check_branch
      %58 = sbr.rel (%p56) target = $region21
    $region20: #{tpu_custom_call.1} parent=1 // pred_region
      %59 = vst [vmem:[#allocation2] sm:$0xff] 0.0
      %v60 = vlaneseq
      %vm61 = vcmp.ge.s32.totalorder %v60, 0
      %vm62 = vcmp.lt.s32.totalorder %v60, 128
      %vm63 = vmand %vm61, %vm62
      %64 = vst.msk [vmem:[#allocation2 + $0x8] sm:$0x1] %vm63, 0.0
    $region21: #{tpu_custom_call.1} parent=1 // pred_fallthru
      _
    %v65 = vld [vmem:[#allocation3] sm:$0xff]
    %v66 = vld [vmem:[#allocation3 + $0x8] sm:$0xff]
    %v67 = vld [vmem:[#allocation3 + $0x10] sm:$0xff]
    %v68 = vld [vmem:[#allocation3 + $0x18] sm:$0xff]
    %v69 = vld [vmem:[#allocation3 + $0x20] sm:$0xf]
    %v70 = vld [vmem:[#allocation6] sm:$0xff]
    %v71 = vld [vmem:[#allocation6 + $0x8] sm:$0xff]
    %v72 = vld [vmem:[#allocation6 + $0x10] sm:$0xff]
    %v73 = vld [vmem:[#allocation6 + $0x18] sm:$0xff]
    %v74 = vld [vmem:[#allocation6 + $0x20] sm:$0xf]
    %v75 = vmax.f32 %v65, 0.0
    %v76 = vmax.f32 %v66, 0.0
    %v77 = vmax.f32 %v67, 0.0
    %v78 = vmax.f32 %v68, 0.0
    %v79 = vmax.f32 %v69, 0.0
    %v80 = vmul.f32 %v65, %v70
    %v81 = vmul.f32 %v66, %v71
    %v82 = vmul.f32 %v67, %v72
    %v83 = vmul.f32 %v68, %v73
    %v84 = vmul.f32 %v69, %v74
    %v85 = vsub.f32 %v75, %v80
    %v86 = vsub.f32 %v76, %v81
    %v87 = vsub.f32 %v77, %v82
    %v88 = vsub.f32 %v78, %v83
    %v89 = vsub.f32 %v79, %v84
    %v90 = vand.u32 2147483647, %v65
    %v91 = vand.u32 2147483647, %v66
    %v92 = vand.u32 2147483647, %v67
    %v93 = vand.u32 2147483647, %v68
    %v94 = vand.u32 2147483647, %v69
    %v95 = vsub.f32 0.0, %v90
    %v96 = vsub.f32 0.0, %v91
    %v97 = vsub.f32 0.0, %v92
    %v98 = vsub.f32 0.0, %v93
    %v99 = vsub.f32 0.0, %v94
    %v100 = vmax.f32 %v95, 0.0
    %v101 = vmax.f32 %v96, 0.0
    %v102 = vmax.f32 %v97, 0.0
    %v103 = vmax.f32 %v98, 0.0
    %v104 = vmax.f32 %v99, 0.0
    %vm105 = vcmp.ne.f32.partialorder %v95, %v95
    %vm106 = vcmp.ne.f32.partialorder %v96, %v96
    %vm107 = vcmp.ne.f32.partialorder %v97, %v97
    %vm108 = vcmp.ne.f32.partialorder %v98, %v98
    %vm109 = vcmp.ne.f32.partialorder %v99, %v99
    %v110 = vadd.f32 %v95, 0.0
    %v111 = vadd.f32 %v96, 0.0
    %v112 = vadd.f32 %v97, 0.0
    %v113 = vadd.f32 %v98, 0.0
    %v114 = vadd.f32 %v99, 0.0
    %v115 = vand.u32 2147483647, %v95
    %v116 = vand.u32 2147483647, %v96
    %v117 = vand.u32 2147483647, %v97
    %v118 = vand.u32 2147483647, %v98
    %v119 = vand.u32 2147483647, %v99
    %v120 = vsub.f32 0.0, %v115
    %v121 = vsub.f32 0.0, %v116
    %v122 = vsub.f32 0.0, %v117
    %v123 = vsub.f32 0.0, %v118
    %v124 = vsub.f32 0.0, %v119
    %v125 = vmul.f32 %v120, 1.442695
    %v126 = vpow.pop %v125
    %v127 = vmul.f32 %v121, 1.442695
    %v128 = vpow.pop %v127
    %v129 = vmul.f32 %v122, 1.442695
    %v130 = vpow.pop %v129
    %v131 = vmul.f32 %v123, 1.442695
    %v132 = vpow.pop %v131
    %v133 = vmul.f32 %v124, 1.442695
    %v134 = vpow.pop %v133
    %v135 = vadd.f32 %v126, 1.0
    %v136 = vlog2.pop %v135
    %v137 = vmul.f32 %v136, 0.6931472
    %v138 = vmul.f32 -0.5, %v126
    %v139 = vadd.f32 %v138, 1.0
    %v140 = vmul.f32 %v139, %v126
    %v141 = vand.u32 2147483647, %v126
    %vm142 = vcmp.lt.f32.partialorder %v141, 0.0004427343
    %v143 = vsel %vm142, %v140, %v137
    %v144 = vadd.f32 %v128, 1.0
    %v145 = vlog2.pop %v144
    %v146 = vmul.f32 %v145, 0.6931472
    %v147 = vmul.f32 -0.5, %v128
    %v148 = vadd.f32 %v147, 1.0
    %v149 = vmul.f32 %v148, %v128
    %v150 = vand.u32 2147483647, %v128
    %vm151 = vcmp.lt.f32.partialorder %v150, 0.0004427343
    %v152 = vsel %vm151, %v149, %v146
    %v153 = vadd.f32 %v130, 1.0
    %v154 = vlog2.pop %v153
    %v155 = vmul.f32 %v154, 0.6931472
    %v156 = vmul.f32 -0.5, %v130
    %v157 = vadd.f32 %v156, 1.0
    %v158 = vmul.f32 %v157, %v130
    %v159 = vand.u32 2147483647, %v130
    %vm160 = vcmp.lt.f32.partialorder %v159, 0.0004427343
    %v161 = vsel %vm160, %v158, %v155
    %v162 = vadd.f32 %v132, 1.0
    %v163 = vlog2.pop %v162
    %v164 = vmul.f32 %v163, 0.6931472
    %v165 = vmul.f32 -0.5, %v132
    %v166 = vadd.f32 %v165, 1.0
    %v167 = vmul.f32 %v166, %v132
    %v168 = vand.u32 2147483647, %v132
    %vm169 = vcmp.lt.f32.partialorder %v168, 0.0004427343
    %v170 = vsel %vm169, %v167, %v164
    %v171 = vadd.f32 %v134, 1.0
    %v172 = vlog2.pop %v171
    %v173 = vmul.f32 %v172, 0.6931472
    %v174 = vmul.f32 -0.5, %v134
    %v175 = vadd.f32 %v174, 1.0
    %v176 = vmul.f32 %v175, %v134
    %v177 = vand.u32 2147483647, %v134
    %vm178 = vcmp.lt.f32.partialorder %v177, 0.0004427343
    %v179 = vsel %vm178, %v176, %v173
    %v180 = vadd.f32 %v100, %v143
    %v181 = vadd.f32 %v101, %v152
    %v182 = vadd.f32 %v102, %v161
    %v183 = vadd.f32 %v103, %v170
    %v184 = vadd.f32 %v104, %v179
    %v185 = vsel %vm105, %v110, %v180
    %v186 = vsel %vm106, %v111, %v181
    %v187 = vsel %vm107, %v112, %v182
    %v188 = vsel %vm108, %v113, %v183
    %v189 = vsel %vm109, %v114, %v184
    %v190 = vadd.f32 %v85, %v185
    %v191 = vadd.f32 %v86, %v186
    %v192 = vadd.f32 %v87, %v187
    %v193 = vadd.f32 %v88, %v188
    %v194 = vadd.f32 %v89, %v189
    %p195 = scmp.lt.s32.totalorder %s54, 0
    // Predicated region
    $region22: #{tpu_custom_call.1} parent=1 // pred_check
      %p196 = pneg %p195
    $region23: #{tpu_custom_call.1} parent=1 // pred_check_branch
      %198 = sbr.rel (%p196) target = $region25
    $region24: #{tpu_custom_call.1} parent=1 // pred_region
      %v199 = vld [vmem:[#allocation2] sm:$0xff]
      %v200 = vld [vmem:[#allocation2 + $0x8] sm:$0x1]
      %v205 = vcombine.high %v190, %v190
      %v206 = vcombine.high %v191, %v191
      %v207 = vcombine.high %v192, %v192
      %v208 = vcombine.high %v193, %v193
      %vm213 = vcmask 1043456
      %v214 = vsel %vm213, %v190, 0.0
      %v215 = vrot.slane %v214, 4
      %v216 = vadd.f32 %v214, %v215
      %v217 = vrot.slane %v216, 2
      %v218 = vadd.f32 %v216, %v217
      %v219 = vrot.slane %v218, 1
      %v220 = vadd.f32 %v218, %v219
      %v221 = vsel %vm213, %v205, 0.0
      %v222 = vrot.slane %v221, 4
      %v223 = vadd.f32 %v221, %v222
      %v224 = vrot.slane %v223, 2
      %v225 = vadd.f32 %v223, %v224
      %v226 = vrot.slane %v225, 1
      %v227 = vadd.f32 %v225, %v226
      %v228 = vsel %vm213, %v191, 0.0
      %v229 = vrot.slane %v228, 4
      %v230 = vadd.f32 %v228, %v229
      %v231 = vrot.slane %v230, 2
      %v232 = vadd.f32 %v230, %v231
      %v233 = vrot.slane %v232, 1
      %v234 = vadd.f32 %v232, %v233
      %v235 = vsel %vm213, %v206, 0.0
      %v236 = vrot.slane %v235, 4
      %v237 = vadd.f32 %v235, %v236
      %v238 = vrot.slane %v237, 2
      %v239 = vadd.f32 %v237, %v238
      %v240 = vrot.slane %v239, 1
      %v241 = vadd.f32 %v239, %v240
      %v242 = vsel %vm213, %v192, 0.0
      %v243 = vrot.slane %v242, 4
      %v244 = vadd.f32 %v242, %v243
      %v245 = vrot.slane %v244, 2
      %v246 = vadd.f32 %v244, %v245
      %v247 = vrot.slane %v246, 1
      %v248 = vadd.f32 %v246, %v247
      %v249 = vsel %vm213, %v207, 0.0
      %v250 = vrot.slane %v249, 4
      %v251 = vadd.f32 %v249, %v250
      %v252 = vrot.slane %v251, 2
      %v253 = vadd.f32 %v251, %v252
      %v254 = vrot.slane %v253, 1
      %v255 = vadd.f32 %v253, %v254
      %v256 = vsel %vm213, %v193, 0.0
      %v257 = vrot.slane %v256, 4
      %v258 = vadd.f32 %v256, %v257
      %v259 = vrot.slane %v258, 2
      %v260 = vadd.f32 %v258, %v259
      %v261 = vrot.slane %v260, 1
      %v262 = vadd.f32 %v260, %v261
      %v263 = vsel %vm213, %v208, 0.0
      %v264 = vrot.slane %v263, 4
      %v265 = vadd.f32 %v263, %v264
      %v266 = vrot.slane %v265, 2
      %v267 = vadd.f32 %v265, %v266
      %v268 = vrot.slane %v267, 1
      %v269 = vadd.f32 %v267, %v268
      %v270 = vsel %vm213, %v194, 0.0
      %v271 = vrot.slane %v270, 4
      %v272 = vadd.f32 %v270, %v271
      %v273 = vrot.slane %v272, 2
      %v274 = vadd.f32 %v272, %v273
      %v275 = vrot.slane %v274, 1
      %v276 = vadd.f32 %v274, %v275
      %v286 = vcombine.low %v220, %v227
      %v287 = vcombine.low %v234, %v241
      %v288 = vcombine.low %v248, %v255
      %v289 = vcombine.low %v262, %v269
      %v291 = vunpack.c.l.s4 1966171168
      %v292 = vunpack.c.0.s8 %v291
      %v293 = vlaneseq
      %v294 = vshrl.u32 %v293, 7
      %v295 = vsub.s32 %v292, %v294
      %v296 = vrot.slane %v286, %v295
      %v298 = vunpack.c.l.s4 1966171168
      %v299 = vunpack.c.0.s8 %v298
      %v300 = vlaneseq
      %v301 = vshrl.u32 %v300, 7
      %v302 = vsub.s32 %v299, %v301
      %v303 = vrot.slane %v287, %v302
      %v305 = vunpack.c.l.s4 1966171168
      %v306 = vunpack.c.0.s8 %v305
      %v307 = vlaneseq
      %v308 = vshrl.u32 %v307, 7
      %v309 = vsub.s32 %v306, %v308
      %v310 = vrot.slane %v288, %v309
      %v312 = vunpack.c.l.s4 1966171168
      %v313 = vunpack.c.0.s8 %v312
      %v314 = vlaneseq
      %v315 = vshrl.u32 %v314, 7
      %v316 = vsub.s32 %v313, %v315
      %v317 = vrot.slane %v289, %v316
      %v318 = vcombine.low %v296, %v303
      %v319 = vcombine.low %v310, %v317
      %v321 = vunpack.c.l.s4 1966171168
      %v322 = vunpack.c.0.s8 %v321
      %v323 = vlaneseq
      %v324 = vshrl.u32 %v323, 7
      %v325 = vsub.s32 %v322, %v324
      %v326 = vrot.slane %v318, %v325
      %v328 = vunpack.c.l.s4 1966171168
      %v329 = vunpack.c.0.s8 %v328
      %v330 = vlaneseq
      %v331 = vshrl.u32 %v330, 7
      %v332 = vsub.s32 %v329, %v331
      %v333 = vrot.slane %v319, %v332
      %v334 = vcombine.low %v326, %v333
      %v336 = vunpack.c.l.s4 1966171168
      %v337 = vunpack.c.0.s8 %v336
      %v338 = vlaneseq
      %v339 = vshrl.u32 %v338, 7
      %v340 = vsub.s32 %v337, %v339
      %v341 = vrot.slane %v276, %v340
      %v343 = vunpack.c.l.s4 1966171168
      %v344 = vunpack.c.0.s8 %v343
      %v345 = vlaneseq
      %v346 = vshrl.u32 %v345, 7
      %v347 = vsub.s32 %v344, %v346
      %v348 = vrot.slane %v341, %v347
      %v351 = vadd.f32 %v199, %v334
      %v352 = vadd.f32 %v200, %v348
      %353 = vst [vmem:[#allocation2] sm:$0xff] %v351
      %v354 = vlaneseq
      %vm355 = vcmp.ge.s32.totalorder %v354, 0
      %vm356 = vcmp.lt.s32.totalorder %v354, 128
      %vm357 = vmand %vm355, %vm356
      %358 = vst.msk [vmem:[#allocation2 + $0x8] sm:$0x1] %vm357, %v352
    $region25: #{tpu_custom_call.1} parent=1 // pred_fallthru
      _
    %p359 = scmp.ge.s32.totalorder %s54, 0
    // Predicated region
    $region26: #{tpu_custom_call.1} parent=1 // pred_check
      %p360 = pneg %p359
    $region27: #{tpu_custom_call.1} parent=1 // pred_check_branch
      %362 = sbr.rel (%p360) target = $region29
    $region28: #{tpu_custom_call.1} parent=1 // pred_region
      %v363 = vlaneseq
      %v364 = vshrl.u32 %v363, 7
      %s365 = smul.u32 %s54, 4
      %v366 = vstv %s365
      %v367 = vadd.s32 %v364, %v366
      %v368 = vlaneseq
      %v369 = vand.u32 %v368, 127
      %v370 = vadd.s32 %v369, 128
      %v371 = vadd.s32 %v369, 256
      %v372 = vadd.s32 %v369, 384
      %v373 = vadd.s32 %v369, 512
      %v374 = vadd.s32 %v369, 640
      %v375 = vadd.s32 %v369, 768
      %v376 = vadd.s32 %v369, 896
      %v377 = vadd.s32 %v369, 1024
      %v378 = vmul.u32 %v367, 1152
      %v379 = vadd.s32 %v378, %v369
      %v380 = vadd.s32 %v378, %v370
      %v381 = vadd.s32 %v378, %v371
      %v382 = vadd.s32 %v378, %v372
      %v383 = vadd.s32 %v378, %v373
      %v384 = vadd.s32 %v378, %v374
      %v385 = vadd.s32 %v378, %v375
      %v386 = vadd.s32 %v378, %v376
      %v387 = vadd.s32 %v378, %v377
      %vm388 = vcmp.lt.s32.totalorder %v379, 3600
      %vm389 = vcmp.lt.s32.totalorder %v380, 3600
      %vm390 = vcmp.lt.s32.totalorder %v381, 3600
      %vm391 = vcmp.lt.s32.totalorder %v382, 3600
      %vm392 = vcmp.lt.s32.totalorder %v383, 3600
      %vm393 = vcmp.lt.s32.totalorder %v384, 3600
      %vm394 = vcmp.lt.s32.totalorder %v385, 3600
      %vm395 = vcmp.lt.s32.totalorder %v386, 3600
      %vm396 = vcmp.lt.s32.totalorder %v387, 3600
      %v397 = vld [vmem:[#allocation2] sm:$0xff]
      %v398 = vld [vmem:[#allocation2 + $0x8] sm:$0x1]
      %v403 = vcombine.high %v190, %v190
      %v404 = vcombine.high %v191, %v191
      %v405 = vcombine.high %v192, %v192
      %v406 = vcombine.high %v193, %v193
      %v411 = vsel %vm388, %v190, 0.0
      %v412 = vsel %vm389, %v403, 0.0
      %v413 = vsel %vm390, %v191, 0.0
      %v414 = vsel %vm391, %v404, 0.0
      %v415 = vsel %vm392, %v192, 0.0
      %v416 = vsel %vm393, %v405, 0.0
      %v417 = vsel %vm394, %v193, 0.0
      %v418 = vsel %vm395, %v406, 0.0
      %v419 = vsel %vm396, %v194, 0.0
      %vm420 = vcmask 1043456
      %v421 = vsel %vm420, %v411, 0.0
      %v422 = vrot.slane %v421, 4
      %v423 = vadd.f32 %v421, %v422
      %v424 = vrot.slane %v423, 2
      %v425 = vadd.f32 %v423, %v424
      %v426 = vrot.slane %v425, 1
      %v427 = vadd.f32 %v425, %v426
      %v428 = vsel %vm420, %v412, 0.0
      %v429 = vrot.slane %v428, 4
      %v430 = vadd.f32 %v428, %v429
      %v431 = vrot.slane %v430, 2
      %v432 = vadd.f32 %v430, %v431
      %v433 = vrot.slane %v432, 1
      %v434 = vadd.f32 %v432, %v433
      %v435 = vsel %vm420, %v413, 0.0
      %v436 = vrot.slane %v435, 4
      %v437 = vadd.f32 %v435, %v436
      %v438 = vrot.slane %v437, 2
      %v439 = vadd.f32 %v437, %v438
      %v440 = vrot.slane %v439, 1
      %v441 = vadd.f32 %v439, %v440
      %v442 = vsel %vm420, %v414, 0.0
      %v443 = vrot.slane %v442, 4
      %v444 = vadd.f32 %v442, %v443
      %v445 = vrot.slane %v444, 2
      %v446 = vadd.f32 %v444, %v445
      %v447 = vrot.slane %v446, 1
      %v448 = vadd.f32 %v446, %v447
      %v449 = vsel %vm420, %v415, 0.0
      %v450 = vrot.slane %v449, 4
      %v451 = vadd.f32 %v449, %v450
      %v452 = vrot.slane %v451, 2
      %v453 = vadd.f32 %v451, %v452
      %v454 = vrot.slane %v453, 1
      %v455 = vadd.f32 %v453, %v454
      %v456 = vsel %vm420, %v416, 0.0
      %v457 = vrot.slane %v456, 4
      %v458 = vadd.f32 %v456, %v457
      %v459 = vrot.slane %v458, 2
      %v460 = vadd.f32 %v458, %v459
      %v461 = vrot.slane %v460, 1
      %v462 = vadd.f32 %v460, %v461
      %v463 = vsel %vm420, %v417, 0.0
      %v464 = vrot.slane %v463, 4
      %v465 = vadd.f32 %v463, %v464
      %v466 = vrot.slane %v465, 2
      %v467 = vadd.f32 %v465, %v466
      %v468 = vrot.slane %v467, 1
      %v469 = vadd.f32 %v467, %v468
      %v470 = vsel %vm420, %v418, 0.0
      %v471 = vrot.slane %v470, 4
      %v472 = vadd.f32 %v470, %v471
      %v473 = vrot.slane %v472, 2
      %v474 = vadd.f32 %v472, %v473
      %v475 = vrot.slane %v474, 1
      %v476 = vadd.f32 %v474, %v475
      %v477 = vsel %vm420, %v419, 0.0
      %v478 = vrot.slane %v477, 4
      %v479 = vadd.f32 %v477, %v478
      %v480 = vrot.slane %v479, 2
      %v481 = vadd.f32 %v479, %v480
      %v482 = vrot.slane %v481, 1
      %v483 = vadd.f32 %v481, %v482
      %v493 = vcombine.low %v427, %v434
      %v494 = vcombine.low %v441, %v448
      %v495 = vcombine.low %v455, %v462
      %v496 = vcombine.low %v469, %v476
      %v498 = vunpack.c.l.s4 1966171168
      %v499 = vunpack.c.0.s8 %v498
      %v500 = vlaneseq
      %v501 = vshrl.u32 %v500, 7
      %v502 = vsub.s32 %v499, %v501
      %v503 = vrot.slane %v493, %v502
      %v505 = vunpack.c.l.s4 1966171168
      %v506 = vunpack.c.0.s8 %v505
      %v507 = vlaneseq
      %v508 = vshrl.u32 %v507, 7
      %v509 = vsub.s32 %v506, %v508
      %v510 = vrot.slane %v494, %v509
      %v512 = vunpack.c.l.s4 1966171168
      %v513 = vunpack.c.0.s8 %v512
      %v514 = vlaneseq
      %v515 = vshrl.u32 %v514, 7
      %v516 = vsub.s32 %v513, %v515
      %v517 = vrot.slane %v495, %v516
      %v519 = vunpack.c.l.s4 1966171168
      %v520 = vunpack.c.0.s8 %v519
      %v521 = vlaneseq
      %v522 = vshrl.u32 %v521, 7
      %v523 = vsub.s32 %v520, %v522
      %v524 = vrot.slane %v496, %v523
      %v525 = vcombine.low %v503, %v510
      %v526 = vcombine.low %v517, %v524
      %v528 = vunpack.c.l.s4 1966171168
      %v529 = vunpack.c.0.s8 %v528
      %v530 = vlaneseq
      %v531 = vshrl.u32 %v530, 7
      %v532 = vsub.s32 %v529, %v531
      %v533 = vrot.slane %v525, %v532
      %v535 = vunpack.c.l.s4 1966171168
      %v536 = vunpack.c.0.s8 %v535
      %v537 = vlaneseq
      %v538 = vshrl.u32 %v537, 7
      %v539 = vsub.s32 %v536, %v538
      %v540 = vrot.slane %v526, %v539
      %v541 = vcombine.low %v533, %v540
      %v543 = vunpack.c.l.s4 1966171168
      %v544 = vunpack.c.0.s8 %v543
      %v545 = vlaneseq
      %v546 = vshrl.u32 %v545, 7
      %v547 = vsub.s32 %v544, %v546
      %v548 = vrot.slane %v483, %v547
      %v550 = vunpack.c.l.s4 1966171168
      %v551 = vunpack.c.0.s8 %v550
      %v552 = vlaneseq
      %v553 = vshrl.u32 %v552, 7
      %v554 = vsub.s32 %v551, %v553
      %v555 = vrot.slane %v548, %v554
      %v558 = vadd.f32 %v397, %v541
      %v559 = vadd.f32 %v398, %v555
      %560 = vst [vmem:[#allocation2] sm:$0xff] %v558
      %v561 = vlaneseq
      %vm562 = vcmp.ge.s32.totalorder %v561, 0
      %vm563 = vcmp.lt.s32.totalorder %v561, 128
      %vm564 = vmand %vm562, %vm563
      %565 = vst.msk [vmem:[#allocation2 + $0x8] sm:$0x1] %vm564, %v559
    $region29: #{tpu_custom_call.1} parent=1 // pred_fallthru
      _
    // Predicated region
    $region30: #{tpu_custom_call.1} parent=1 // pred_check
      %p566 = pneg %p55
    $region31: #{tpu_custom_call.1} parent=1 // pred_check_branch
      %568 = sbr.rel (%p566) target = $region33
    $region32: #{tpu_custom_call.1} parent=1 // pred_region
      %v569 = vld [vmem:[#allocation2] sm:$0xff]
      %v570 = vld [vmem:[#allocation2 + $0x8] sm:$0x1]
      %v571 = vlaneseq
      %v572 = vand.u32 %v571, 127
      %v573 = vadd.s32 %v572, 128
      %v574 = vadd.s32 %v572, 256
      %v575 = vadd.s32 %v572, 384
      %v576 = vadd.s32 %v572, 512
      %v577 = vadd.s32 %v572, 640
      %v578 = vadd.s32 %v572, 768
      %v579 = vadd.s32 %v572, 896
      %v580 = vadd.s32 %v572, 1024
      %vm581 = vcmp.lt.s32.totalorder %v572, 0
      %v582 = vsub.s32 0, %v572
      %v583 = vsel %vm581, %v582, %v572
      %v584 = vmul.u32.u64.compose %v583, 3817748708
      %v585 = vextract.low.u32 %v584
      %v586 = vextract.high.u32 %v584
      %v587 = vshrl.u32 %v586, 4
      %v588 = vmul.u32 %v587, 18
      %v589 = vsub.s32 %v583, %v588
      %v590 = vsub.s32 0, %v589
      %v591 = vsel %vm581, %v590, %v589
      %vm592 = vcmp.lt.s32.totalorder %v573, 0
      %v593 = vsub.s32 0, %v573
      %v594 = vsel %vm592, %v593, %v573
      %v595 = vmul.u32.u64.compose %v594, 3817748708
      %v596 = vextract.low.u32 %v595
      %v597 = vextract.high.u32 %v595
      %v598 = vshrl.u32 %v597, 4
      %v599 = vmul.u32 %v598, 18
      %v600 = vsub.s32 %v594, %v599
      %v601 = vsub.s32 0, %v600
      %v602 = vsel %vm592, %v601, %v600
      %vm603 = vcmp.lt.s32.totalorder %v574, 0
      %v604 = vsub.s32 0, %v574
      %v605 = vsel %vm603, %v604, %v574
      %v606 = vmul.u32.u64.compose %v605, 3817748708
      %v607 = vextract.low.u32 %v606
      %v608 = vextract.high.u32 %v606
      %v609 = vshrl.u32 %v608, 4
      %v610 = vmul.u32 %v609, 18
      %v611 = vsub.s32 %v605, %v610
      %v612 = vsub.s32 0, %v611
      %v613 = vsel %vm603, %v612, %v611
      %vm614 = vcmp.lt.s32.totalorder %v575, 0
      %v615 = vsub.s32 0, %v575
      %v616 = vsel %vm614, %v615, %v575
      %v617 = vmul.u32.u64.compose %v616, 3817748708
      %v618 = vextract.low.u32 %v617
      %v619 = vextract.high.u32 %v617
      %v620 = vshrl.u32 %v619, 4
      %v621 = vmul.u32 %v620, 18
      %v622 = vsub.s32 %v616, %v621
      %v623 = vsub.s32 0, %v622
      %v624 = vsel %vm614, %v623, %v622
      %vm625 = vcmp.lt.s32.totalorder %v576, 0
      %v626 = vsub.s32 0, %v576
      %v627 = vsel %vm625, %v626, %v576
      %v628 = vmul.u32.u64.compose %v627, 3817748708
      %v629 = vextract.low.u32 %v628
      %v630 = vextract.high.u32 %v628
      %v631 = vshrl.u32 %v630, 4
      %v632 = vmul.u32 %v631, 18
      %v633 = vsub.s32 %v627, %v632
      %v634 = vsub.s32 0, %v633
      %v635 = vsel %vm625, %v634, %v633
      %vm636 = vcmp.lt.s32.totalorder %v577, 0
      %v637 = vsub.s32 0, %v577
      %v638 = vsel %vm636, %v637, %v577
      %v639 = vmul.u32.u64.compose %v638, 3817748708
      %v640 = vextract.low.u32 %v639
      %v641 = vextract.high.u32 %v639
      %v642 = vshrl.u32 %v641, 4
      %v643 = vmul.u32 %v642, 18
      %v644 = vsub.s32 %v638, %v643
      %v645 = vsub.s32 0, %v644
      %v646 = vsel %vm636, %v645, %v644
      %vm647 = vcmp.lt.s32.totalorder %v578, 0
      %v648 = vsub.s32 0, %v578
      %v649 = vsel %vm647, %v648, %v578
      %v650 = vmul.u32.u64.compose %v649, 3817748708
      %v651 = vextract.low.u32 %v650
      %v652 = vextract.high.u32 %v650
      %v653 = vshrl.u32 %v652, 4
      %v654 = vmul.u32 %v653, 18
      %v655 = vsub.s32 %v649, %v654
      %v656 = vsub.s32 0, %v655
      %v657 = vsel %vm647, %v656, %v655
      %vm658 = vcmp.lt.s32.totalorder %v579, 0
      %v659 = vsub.s32 0, %v579
      %v660 = vsel %vm658, %v659, %v579
      %v661 = vmul.u32.u64.compose %v660, 3817748708
      %v662 = vextract.low.u32 %v661
      %v663 = vextract.high.u32 %v661
      %v664 = vshrl.u32 %v663, 4
      %v665 = vmul.u32 %v664, 18
      %v666 = vsub.s32 %v660, %v665
      %v667 = vsub.s32 0, %v666
      %v668 = vsel %vm658, %v667, %v666
      %vm669 = vcmp.lt.s32.totalorder %v580, 0
      %v670 = vsub.s32 0, %v580
      %v671 = vsel %vm669, %v670, %v580
      %v672 = vmul.u32.u64.compose %v671, 3817748708
      %v673 = vextract.low.u32 %v672
      %v674 = vextract.high.u32 %v672
      %v675 = vshrl.u32 %v674, 4
      %v676 = vmul.u32 %v675, 18
      %v677 = vsub.s32 %v671, %v676
      %v678 = vsub.s32 0, %v677
      %v679 = vsel %vm669, %v678, %v677
      %vm680 = vcmp.ne.s32.totalorder %v591, 0
      %vm681 = vcmp.ne.s32.totalorder %v602, 0
      %vm682 = vcmp.ne.s32.totalorder %v613, 0
      %vm683 = vcmp.ne.s32.totalorder %v624, 0
      %vm684 = vcmp.ne.s32.totalorder %v635, 0
      %vm685 = vcmp.ne.s32.totalorder %v646, 0
      %vm686 = vcmp.ne.s32.totalorder %v657, 0
      %vm687 = vcmp.ne.s32.totalorder %v668, 0
      %vm688 = vcmp.ne.s32.totalorder %v679, 0
      %vm689 = vcmp.lt.s32.totalorder %v591, 0
      %vm690 = vcmp.lt.s32.totalorder %v602, 0
      %vm691 = vcmp.lt.s32.totalorder %v613, 0
      %vm692 = vcmp.lt.s32.totalorder %v624, 0
      %vm693 = vcmp.lt.s32.totalorder %v635, 0
      %vm694 = vcmp.lt.s32.totalorder %v646, 0
      %vm695 = vcmp.lt.s32.totalorder %v657, 0
      %vm696 = vcmp.lt.s32.totalorder %v668, 0
      %vm697 = vcmp.lt.s32.totalorder %v679, 0
      %vm698 = vmand %vm689, %vm680
      %vm699 = vmand %vm690, %vm681
      %vm700 = vmand %vm691, %vm682
      %vm701 = vmand %vm692, %vm683
      %vm702 = vmand %vm693, %vm684
      %vm703 = vmand %vm694, %vm685
      %vm704 = vmand %vm695, %vm686
      %vm705 = vmand %vm696, %vm687
      %vm706 = vmand %vm697, %vm688
      %v707 = vadd.s32 %v591, 18
      %v708 = vadd.s32 %v602, 18
      %v709 = vadd.s32 %v613, 18
      %v710 = vadd.s32 %v624, 18
      %v711 = vadd.s32 %v635, 18
      %v712 = vadd.s32 %v646, 18
      %v713 = vadd.s32 %v657, 18
      %v714 = vadd.s32 %v668, 18
      %v715 = vadd.s32 %v679, 18
      %v716 = vsel %vm698, %v707, %v591
      %v717 = vsel %vm699, %v708, %v602
      %v718 = vsel %vm700, %v709, %v613
      %v719 = vsel %vm701, %v710, %v624
      %v720 = vsel %vm702, %v711, %v635
      %v721 = vsel %vm703, %v712, %v646
      %v722 = vsel %vm704, %v713, %v657
      %v723 = vsel %vm705, %v714, %v668
      %v724 = vsel %vm706, %v715, %v679
      %vm725 = vcmp.ge.s32.totalorder %v716, 0
      %vm726 = vcmp.ge.s32.totalorder %v717, 0
      %vm727 = vcmp.ge.s32.totalorder %v718, 0
      %vm728 = vcmp.ge.s32.totalorder %v719, 0
      %vm729 = vcmp.ge.s32.totalorder %v720, 0
      %vm730 = vcmp.ge.s32.totalorder %v721, 0
      %vm731 = vcmp.ge.s32.totalorder %v722, 0
      %vm732 = vcmp.ge.s32.totalorder %v723, 0
      %vm733 = vcmp.ge.s32.totalorder %v724, 0
      %vm734 = vcmp.lt.s32.totalorder %v716, 3
      %vm735 = vcmp.lt.s32.totalorder %v717, 3
      %vm736 = vcmp.lt.s32.totalorder %v718, 3
      %vm737 = vcmp.lt.s32.totalorder %v719, 3
      %vm738 = vcmp.lt.s32.totalorder %v720, 3
      %vm739 = vcmp.lt.s32.totalorder %v721, 3
      %vm740 = vcmp.lt.s32.totalorder %v722, 3
      %vm741 = vcmp.lt.s32.totalorder %v723, 3
      %vm742 = vcmp.lt.s32.totalorder %v724, 3
      %vm743 = vmand %vm725, %vm734
      %vm744 = vmand %vm726, %vm735
      %vm745 = vmand %vm727, %vm736
      %vm746 = vmand %vm728, %vm737
      %vm747 = vmand %vm729, %vm738
      %vm748 = vmand %vm730, %vm739
      %vm749 = vmand %vm731, %vm740
      %vm750 = vmand %vm732, %vm741
      %vm751 = vmand %vm733, %vm742
      %v754 = vlaneseq
      %v755 = vshrl.u32 %v754, 7
      %v756 = vsub.s32 0, %v755
      %v757 = vrot.slane %v569, %v756
      %v758 = vlaneseq
      %v759 = vshrl.u32 %v758, 7
      %v760 = vsub.s32 1, %v759
      %v761 = vrot.slane %v569, %v760
      %v762 = vlaneseq
      %v763 = vshrl.u32 %v762, 7
      %v764 = vsub.s32 2, %v763
      %v765 = vrot.slane %v569, %v764
      %v766 = vlaneseq
      %v767 = vshrl.u32 %v766, 7
      %v768 = vsub.s32 3, %v767
      %v769 = vrot.slane %v569, %v768
      %v770 = vlaneseq
      %v771 = vshrl.u32 %v770, 7
      %v772 = vsub.s32 4, %v771
      %v773 = vrot.slane %v569, %v772
      %v774 = vlaneseq
      %v775 = vshrl.u32 %v774, 7
      %v776 = vsub.s32 5, %v775
      %v777 = vrot.slane %v569, %v776
      %v778 = vlaneseq
      %v779 = vshrl.u32 %v778, 7
      %v780 = vsub.s32 6, %v779
      %v781 = vrot.slane %v569, %v780
      %v782 = vlaneseq
      %v783 = vshrl.u32 %v782, 7
      %v784 = vsub.s32 7, %v783
      %v785 = vrot.slane %v569, %v784
      %v786 = vlaneseq
      %v787 = vshrl.u32 %v786, 7
      %v788 = vsub.s32 0, %v787
      %v789 = vrot.slane %v570, %v788
      %v799 = vsel %vm743, %v757, 0.0
      %v800 = vsel %vm744, %v761, 0.0
      %v801 = vsel %vm745, %v765, 0.0
      %v802 = vsel %vm746, %v769, 0.0
      %v803 = vsel %vm747, %v773, 0.0
      %v804 = vsel %vm748, %v777, 0.0
      %v805 = vsel %vm749, %v781, 0.0
      %v806 = vsel %vm750, %v785, 0.0
      %v807 = vsel %vm751, %v789, 0.0
      %vm808 = vcmask 1040384
      %v809 = vsel %vm808, %v799, 0.0
      %v810 = vsel %vm808, %v800, 0.0
      %v811 = vadd.f32 %v809, %v810
      %v812 = vsel %vm808, %v801, 0.0
      %v813 = vadd.f32 %v811, %v812
      %v814 = vsel %vm808, %v802, 0.0
      %v815 = vadd.f32 %v813, %v814
      %v816 = vsel %vm808, %v803, 0.0
      %v817 = vadd.f32 %v815, %v816
      %v818 = vsel %vm808, %v804, 0.0
      %v819 = vadd.f32 %v817, %v818
      %v820 = vsel %vm808, %v805, 0.0
      %v821 = vadd.f32 %v819, %v820
      %v822 = vsel %vm808, %v806, 0.0
      %v823 = vadd.f32 %v821, %v822
      %v824 = vsel %vm808, %v807, 0.0
      %v825 = vadd.f32 %v823, %v824
      %826 = vadd.xlane.f32.xlu0 %v825
      %v827 = vpop.xlane.xlu0 %826
      %v828 = vrot.slane %v827, 4
      %v829 = vadd.f32 %v827, %v828
      %v830 = vrot.slane %v829, 2
      %v831 = vadd.f32 %v829, %v830
      %v832 = vrot.slane %v831, 1
      %v833 = vadd.f32 %v831, %v832
      %s834 = vtos %v833
      %v835 = vsel %vm743, 0.0, %v757
      %v836 = vsel %vm744, 0.0, %v761
      %v837 = vsel %vm745, 0.0, %v765
      %v838 = vsel %vm746, 0.0, %v769
      %v839 = vsel %vm747, 0.0, %v773
      %v840 = vsel %vm748, 0.0, %v777
      %v841 = vsel %vm749, 0.0, %v781
      %v842 = vsel %vm750, 0.0, %v785
      %v843 = vsel %vm751, 0.0, %v789
      %v844 = vsel %vm808, %v835, 0.0
      %v845 = vsel %vm808, %v836, 0.0
      %v846 = vadd.f32 %v844, %v845
      %v847 = vsel %vm808, %v837, 0.0
      %v848 = vadd.f32 %v846, %v847
      %v849 = vsel %vm808, %v838, 0.0
      %v850 = vadd.f32 %v848, %v849
      %v851 = vsel %vm808, %v839, 0.0
      %v852 = vadd.f32 %v850, %v851
      %v853 = vsel %vm808, %v840, 0.0
      %v854 = vadd.f32 %v852, %v853
      %v855 = vsel %vm808, %v841, 0.0
      %v856 = vadd.f32 %v854, %v855
      %v857 = vsel %vm808, %v842, 0.0
      %v858 = vadd.f32 %v856, %v857
      %v859 = vsel %vm808, %v843, 0.0
      %v860 = vadd.f32 %v858, %v859
      %861 = vadd.xlane.f32.xlu0 %v860
      %v862 = vpop.xlane.xlu0 %861
      %v863 = vrot.slane %v862, 4
      %v864 = vadd.f32 %v862, %v863
      %v865 = vrot.slane %v864, 2
      %v866 = vadd.f32 %v864, %v865
      %v867 = vrot.slane %v866, 1
      %v868 = vadd.f32 %v866, %v867
      %s869 = vtos %v868
      %vm870 = vcmp.eq.s32.totalorder %v572, 0
      %vm871 = vcmp.eq.s32.totalorder %v572, 1
      %v872 = vstv %s869
      %v873 = vsel %vm871, %v872, 0.0
      %v874 = vstv %s834
      %v875 = vsel %vm870, %v874, %v873
      %876 = vst [vmem:[#allocation8] sm:$0xff] %v875
    $region33: #{tpu_custom_call.1} parent=1 // pred_fallthru
      _
    // Predicated region
    $region34: #{tpu_custom_call.1} parent=1 // pred_check
      _
    $region35: #{tpu_custom_call.1} parent=1 // pred_check_branch
      %878 = sbr.rel (0) target = $region37
    $region36: #{tpu_custom_call.1} parent=1 // pred_region
      %s880 = ssub.s32 128, 128
      %881 = vsyncadd [#allocation5], %s880
      %s883 = sshll.u32 [#allocation8], 4
      %s884 = int_to_ptr.vmem [resolvable:$true] %s883
      %886 = dma.vmem_to_hbm [thread:$0]  %s884, 128, %s2, [#allocation5]
    $region37: #{tpu_custom_call.1} parent=1 // pred_fallthru
      _
    // Predicated region
    $region38: #{tpu_custom_call.1} parent=1 // pred_check
      _
    $region39: #{tpu_custom_call.1} parent=1 // pred_check_branch
      %888 = sbr.rel (0) target = $region41
    $region40: #{tpu_custom_call.1} parent=1 // pred_region
      %889 = dma.done [#allocation5], 128
    $region41: #{tpu_custom_call.1} parent=1 // pred_fallthru
      _
    %890 = vsyncpa [#allocation4], 1
    %891 = vsyncpa [#allocation7], 1
    %892 = vsyncpa [#allocation5], 1

</llo_original>
